<compile_context>
chip_gen: v7x
topology: tpu7x:2x2x1
jax: 0.10.0
libtpu: 0.0.40
codegen_flags: <defaults>
</compile_context>

<pallas_src>
import numpy as np
import jax
import jax.numpy as jnp
from jax.experimental import pallas as pl
from jax.experimental.pallas import tpu as pltpu

NEGATIVE_SLOPE = 0.01
BN_EPS = 1e-5
OUT_PAD = 128            # lane-dense packed slab width (one full lane vector)


def _round_up(x, m):
    return ((x + m - 1) // m) * m


# ---------------------------------------------------------------------------
# Kernel: one grid step = tile_b batch rows; all packed params VMEM-resident.
# ---------------------------------------------------------------------------
def _make_kernel(h1, h2, a_dim):
    def kernel(state_ref, action_ref,
               w1_ref, b1_ref, w2_ref, w2a_ref, b2_ref, wo_ref, bo_ref,
               out_ref):
        lane = jax.lax.broadcasted_iota(jnp.int32, (1, OUT_PAD), 1)

        def mm(lhs, w_ref):
            # bf16 operands on the MXU, f32 accumulation.
            return jnp.dot(lhs.astype(w_ref.dtype), w_ref[...],
                           preferred_element_type=jnp.float32)

        def dual_act(v, actor_width):
            # actor lanes [0, actor_width) -> relu ; critic lanes -> leaky_relu.
            # Zero-padded lanes are exactly 0 under either activation.
            return jnp.where(lane < actor_width,
                             jnp.maximum(v, 0.0),
                             jnp.where(v >= 0.0, v, NEGATIVE_SLOPE * v))

        x = state_ref[...]                       # (TB, S)  f32
        act = action_ref[...]                    # (TB, A)  f32

        y1 = mm(x, w1_ref) + b1_ref[...]         # (TB, 128) BN already folded
        s1 = dual_act(y1, h1)

        y2 = mm(s1, w2_ref) + mm(act, w2a_ref) + b2_ref[...]
        s2 = dual_act(y2, h2)

        y3 = mm(s2, wo_ref) + bo_ref[...]        # actor cols [0,A), critic col A
        # tanh only on actor lanes; critic column and zero-padded lanes untouched.
        out_ref[...] = jnp.where(lane < a_dim, jnp.tanh(y3), y3)

    return kernel


# ---------------------------------------------------------------------------
# Wrapper helpers
# ---------------------------------------------------------------------------
def _build_fused_params(state, action_size, ap, cp):
    """Full-batch BN stats (one pass), BN fold into L1 (f32), lane packing."""
    f32 = jnp.float32
    bf16 = jnp.bfloat16
    B, S = state.shape
    H1 = ap["w1"].shape[1]
    H2 = ap["w2"].shape[1]
    A = action_size
    assert 2 * H1 <= OUT_PAD and 2 * H2 <= OUT_PAD and A + 1 <= OUT_PAD

    # one-pass, full-batch, biased variance (PyTorch BatchNorm1d train mode)
    s1 = jnp.sum(state, axis=0, keepdims=True)
    s2 = jnp.sum(state * state, axis=0, keepdims=True)
    mean = s1 / B
    var = s2 / B - mean * mean
    rstd = jax.lax.rsqrt(var + BN_EPS)

    def fold(p):
        scale = p["gamma"] * rstd                 # (1, S)
        shift = p["beta"] - mean * scale          # (1, S)
        return scale.reshape(-1, 1) * p["w1"], p["b1"] + shift @ p["w1"]

    aw1, ab1 = fold(ap)
    cw1, cb1 = fold(cp)

    # layer 1: actor -> lanes [0,H1), critic -> lanes [H1,2H1)
    W1 = (jnp.zeros((S, OUT_PAD), f32)
          .at[:, :H1].set(aw1).at[:, H1:2 * H1].set(cw1))
    B1 = (jnp.zeros((1, OUT_PAD), f32)
          .at[:, :H1].set(ab1).at[:, H1:2 * H1].set(cb1))

    # layer 2 (block-diagonal): rows = slab-1 lanes, cols = slab-2 lanes
    W2 = (jnp.zeros((OUT_PAD, OUT_PAD), f32)
          .at[:H1, :H2].set(ap["w2"])
          .at[H1:2 * H1, H2:2 * H2].set(cp["w2h"]))
    W2A = jnp.zeros((A, OUT_PAD), f32).at[:, H2:2 * H2].set(cp["w2a"])
    B2 = (jnp.zeros((1, OUT_PAD), f32)
          .at[:, :H2].set(ap["b2"]).at[:, H2:2 * H2].set(cp["b2"]))

    # output heads: actor -> cols [0,A), critic -> col A
    WO = (jnp.zeros((OUT_PAD, OUT_PAD), f32)
          .at[:H2, :A].set(ap["wo"])
          .at[H2:2 * H2, A:A + 1].set(cp["wo"]))
    BO = (jnp.zeros((1, OUT_PAD), f32)
          .at[:, :A].set(ap["bo"]).at[:, A:A + 1].set(cp["bo"]))

    return (W1.astype(bf16), B1, W2.astype(bf16), W2A.astype(bf16), B2,
            WO.astype(bf16), BO, H1, H2)


def _pick_tile(B, cap):
    """Prefer 2 balanced 8-aligned steps (both v7x TensorCores), else a single
    whole-batch step (block == full dims, always layout-legal), else the
    largest 8-aligned divisor <= cap.  Returns (tile, needs_pad)."""
    if B >= 32 and B % 16 == 0 and B // 2 <= cap:
        return B // 2, False
    if B <= cap:
        return B, False
    for t in range(cap - cap % 8, 7, -8):
        if B % t == 0:
            return t, False
    return cap - cap % 8, True


# ---------------------------------------------------------------------------
# Fused forward
# ---------------------------------------------------------------------------
def fused_forward(state, action, actor_p, critic_p, *, tile_b=None, cap=4096):
    """Returns (actor_out [B, A], critic_out [B, 1])."""
    f32 = jnp.float32
    state = state.astype(f32)
    action = action.astype(f32)
    B, S = state.shape
    A = action.shape[1]

    W1, B1, W2, W2A, B2, WO, BO, H1, H2 = _build_fused_params(
        state, A, actor_p, critic_p)

    if tile_b is None:
        tile_b, needs_pad = _pick_tile(B, cap)
    else:
        tile_b = min(_round_up(tile_b, 8), _round_up(B, 8))
        needs_pad = (B % tile_b != 0)

    if needs_pad:
        # Rare fallback (huge awkward batch or explicit odd tile).
        Bp = _round_up(B, tile_b)
        state_in = jnp.zeros((Bp, S), f32).at[:B].set(state)
        action_in = jnp.zeros((Bp, A), f32).at[:B].set(action)
    else:
        Bp, state_in, action_in = B, state, action

    grid = (Bp // tile_b,)

    args = (state_in, action_in, W1, B1, W2, W2A, B2, WO, BO)

    def tiled(feat):
        return pl.BlockSpec((tile_b, feat), lambda i: (i, 0))

    def resident(arr):                       # whole array, constant index map
        return pl.BlockSpec(arr.shape, lambda i: (0, 0))

    in_specs = [tiled(S), tiled(A)] + [resident(a) for a in args[2:]]

    packed = pl.pallas_call(
        _make_kernel(H1, H2, A),
        out_shape=jax.ShapeDtypeStruct((Bp, OUT_PAD), f32),
        grid=grid,
        in_specs=in_specs,
        out_specs=pl.BlockSpec((tile_b, OUT_PAD), lambda i: (i, 0)),
        compiler_params=pltpu.CompilerParams(
            dimension_semantics=("parallel",),        # batch tiles across TCs
            vmem_limit_bytes=32 * 1024 * 1024),
    )(*args)

    return packed[:B, :A], packed[:B, A:A + 1]


# ---------------------------------------------------------------------------
# Deterministic parameter construction (mirrors reset_parameters + defaults)
# Linear weights stored pre-transposed as [in_features, out_features] (f32).
# ---------------------------------------------------------------------------
def _kaiming_normal(key, fan_in, fan_out, a=NEGATIVE_SLOPE):
    gain = np.sqrt(2.0 / (1.0 + a * a))
    std = gain / np.sqrt(fan_in)
    return std * jax.random.normal(key, (fan_in, fan_out), dtype=jnp.float32)


def _bias_default(key, fan_in, fan_out):
    lim = 1.0 / np.sqrt(fan_in)
    return jax.random.uniform(key, (1, fan_out), jnp.float32, -lim, lim)


def make_params(key, state_size, action_size, hidden, critic=False):
    h1, h2 = hidden
    keys = jax.random.split(key, 6)
    p = {
        "gamma": jnp.ones((1, state_size), jnp.float32),
        "beta": jnp.zeros((1, state_size), jnp.float32),
        "w1": _kaiming_normal(keys[0], state_size, h1),
        "b1": _bias_default(keys[1], state_size, h1),
    }
    if critic:
        # last *hidden* layer weight ~ uniform(-3e-3, 3e-3); output keeps default.
        w2 = jax.random.uniform(keys[2], (h1 + action_size, h2),
                                jnp.float32, -3e-3, 3e-3)
        p["w2h"] = w2[:h1]
        p["w2a"] = w2[h1:]
        p["b2"] = _bias_default(keys[3], h1 + action_size, h2)
        lim = 1.0 / np.sqrt(h2)
        p["wo"] = jax.random.uniform(keys[4], (h2, 1), jnp.float32, -lim, lim)
        p["bo"] = _bias_default(keys[5], h2, 1)
    else:
        p["w2"] = _kaiming_normal(keys[2], h1, h2)
        p["b2"] = _bias_default(keys[3], h1, h2)
        p["wo"] = jax.random.uniform(keys[4], (h2, action_size),
                                     jnp.float32, -3e-3, 3e-3)
        p["bo"] = _bias_default(keys[5], h2, action_size)
    return p


# ---------------------------------------------------------------------------
# Pure-JAX reference: module semantics with the same numerics recipe
# (BN folded into L1 in f32, bf16 operands at every matmul, f32 accumulate,
#  f32 elementwise) but WITHOUT any lane packing / dot fusion.
# ---------------------------------------------------------------------------
def fused_ref(state, action, ap, cp):
    f32, bf16 = jnp.float32, jnp.bfloat16
    state = state.astype(f32)
    action = action.astype(f32)
    B = state.shape[0]

    s1 = jnp.sum(state, axis=0, keepdims=True)
    s2 = jnp.sum(state * state, axis=0, keepdims=True)
    mean = s1 / B
    var = s2 / B - mean * mean
    rstd = jax.lax.rsqrt(var + BN_EPS)

    def fold(p):
        scale = p["gamma"] * rstd
        shift = p["beta"] - mean * scale
        return scale.reshape(-1, 1) * p["w1"], p["b1"] + shift @ p["w1"]

    def mm(x, w):
        return jnp.dot(x.astype(bf16), w.astype(bf16),
                       preferred_element_type=f32)

    def lrelu(v):
        return jnp.where(v >= 0, v, NEGATIVE_SLOPE * v)

    aw1, ab1 = fold(ap)
    h = jnp.maximum(mm(state, aw1) + ab1, 0.0)
    h = jnp.maximum(mm(h, ap["w2"]) + ap["b2"], 0.0)
    a_out = jnp.tanh(mm(h, ap["wo"]) + ap["bo"])

    cw1, cb1 = fold(cp)
    g = lrelu(mm(state, cw1) + cb1)
    z = lrelu(mm(g, cp["w2h"]) + mm(action, cp["w2a"]) + cp["b2"])
    c_out = mm(z, cp["wo"]) + cp["bo"]
    return a_out, c_out


if __name__ == "__main__":
    STATE, ACTION, HIDDEN = 16, 4, [32, 32]

    key = jax.random.PRNGKey(0)
    k_ap, k_cp = jax.random.split(key, 2)
    actor_p = make_params(k_ap, STATE, ACTION, list(HIDDEN), critic=False)
    critic_p = make_params(k_cp, STATE, ACTION, list(HIDDEN), critic=True)

    # B=8   -> single whole-batch step
    # B=64  -> two balanced 8-aligned steps (v7x dual-TensorCore path)
    # B=300 -> single step with batch not a multiple of 8 (no pad copy)
    for B in (8, 64, 300):
        ks_s, ks_a = jax.random.split(jax.random.fold_in(key, B), 2)
        state = jax.random.normal(ks_s, (B, STATE), dtype=jnp.float32)
        action = jax.random.normal(ks_a, (B, ACTION), dtype=jnp.float32)

        a_out, c_out = jax.block_until_ready(
            fused_forward(state, action, actor_p, critic_p))
        a_ref, c_ref = fused_ref(state, action, actor_p, critic_p)

        np.testing.assert_allclose(np.asarray(a_out), np.asarray(a_ref),
                                   rtol=1e-3, atol=1e-3)
        np.testing.assert_allclose(np.asarray(c_out), np.asarray(c_ref),
                                   rtol=1e-3, atol=1e-3)
        assert a_out.shape == (B, ACTION) and c_out.shape == (B, 1)

    print("KERNEL_OK")
</pallas_src>

<mosaic_0001>
module attributes {stable_mosaic.version = 11 : i64} {
  func.func @kernel(%arg0: i32, %arg1: memref<8x16xf32, #tpu.memory_space<vmem>>, %arg2: memref<8x4xf32, #tpu.memory_space<vmem>>, %arg3: memref<16x128xbf16, #tpu.memory_space<vmem>>, %arg4: memref<1x128xf32, #tpu.memory_space<vmem>>, %arg5: memref<128x128xbf16, #tpu.memory_space<vmem>>, %arg6: memref<4x128xbf16, #tpu.memory_space<vmem>>, %arg7: memref<1x128xf32, #tpu.memory_space<vmem>>, %arg8: memref<128x128xbf16, #tpu.memory_space<vmem>>, %arg9: memref<1x128xf32, #tpu.memory_space<vmem>>, %arg10: memref<8x128xf32, #tpu.memory_space<vmem>>) attributes {dimension_semantics = [#tpu.dimension_semantics<parallel>], iteration_bounds = array<i64: 1>, scalar_prefetch = 0 : i64, scratch_operands = 0 : i64, tpu.core_type = #tpu.core_type<tc>, window_params = [{transform_indices = @transform_0, window_bounds = array<i64: 8, 16>}, {transform_indices = @transform_1, window_bounds = array<i64: 8, 4>}, {pipeline_mode = #tpu.pipeline_mode<synchronous>, transform_indices = @transform_2, window_bounds = array<i64: 16, 128>}, {pipeline_mode = #tpu.pipeline_mode<synchronous>, transform_indices = @transform_3, window_bounds = array<i64: 1, 128>}, {pipeline_mode = #tpu.pipeline_mode<synchronous>, transform_indices = @transform_4, window_bounds = array<i64: 128, 128>}, {pipeline_mode = #tpu.pipeline_mode<synchronous>, transform_indices = @transform_5, window_bounds = array<i64: 4, 128>}, {pipeline_mode = #tpu.pipeline_mode<synchronous>, transform_indices = @transform_6, window_bounds = array<i64: 1, 128>}, {pipeline_mode = #tpu.pipeline_mode<synchronous>, transform_indices = @transform_7, window_bounds = array<i64: 128, 128>}, {pipeline_mode = #tpu.pipeline_mode<synchronous>, transform_indices = @transform_8, window_bounds = array<i64: 1, 128>}, {transform_indices = @transform_9, window_bounds = array<i64: 8, 128>}]} {
    %0 = tpu.iota {dimensions = array<i32: 1>} : vector<1x128xi32>
    %c0 = arith.constant 0 : index
    %c0_0 = arith.constant 0 : index
    %1 = vector.load %arg1[%c0, %c0_0] : memref<8x16xf32, #tpu.memory_space<vmem>>, vector<8x16xf32>
    %c0_1 = arith.constant 0 : index
    %c0_2 = arith.constant 0 : index
    %2 = vector.load %arg2[%c0_1, %c0_2] : memref<8x4xf32, #tpu.memory_space<vmem>>, vector<8x4xf32>
    %3 = arith.truncf %1 : vector<8x16xf32> to vector<8x16xbf16>
    %c0_3 = arith.constant 0 : index
    %c0_4 = arith.constant 0 : index
    %4 = vector.load %arg3[%c0_3, %c0_4] : memref<16x128xbf16, #tpu.memory_space<vmem>>, vector<16x128xbf16>
    %cst = arith.constant dense<0.000000e+00> : vector<8x128xf32>
    %5 = tpu.matmul %3, %4, %cst {dimension_numbers = #tpu.dot_dimension_numbers<[1], [0], [0], [1], [0, 0, 1, 1], [], []>} : vector<8x16xbf16>, vector<16x128xbf16>, vector<8x128xf32> -> vector<8x128xf32>
    %c0_5 = arith.constant 0 : index
    %c0_6 = arith.constant 0 : index
    %6 = vector.load %arg4[%c0_5, %c0_6] : memref<1x128xf32, #tpu.memory_space<vmem>>, vector<1x128xf32>
    %7 = vector.broadcast %6 : vector<1x128xf32> to vector<8x128xf32>
    %8 = arith.addf %5, %7 : vector<8x128xf32>
    %c32_i32 = arith.constant 32 : i32
    %9 = vector.broadcast %c32_i32 : i32 to vector<1x128xi32>
    %10 = arith.cmpi slt, %0, %9 : vector<1x128xi32>
    %cst_7 = arith.constant 0.000000e+00 : f32
    %11 = vector.broadcast %cst_7 : f32 to vector<8x128xf32>
    %12 = arith.maximumf %8, %11 : vector<8x128xf32>
    %cst_8 = arith.constant 0.000000e+00 : f32
    %13 = vector.broadcast %cst_8 : f32 to vector<8x128xf32>
    %14 = arith.cmpf oge, %8, %13 : vector<8x128xf32>
    %cst_9 = arith.constant 0.00999999977 : f32
    %15 = vector.broadcast %cst_9 : f32 to vector<8x128xf32>
    %16 = arith.mulf %15, %8 : vector<8x128xf32>
    %17 = arith.select %14, %8, %16 : vector<8x128xi1>, vector<8x128xf32>
    %18 = vector.shape_cast %10 : vector<1x128xi1> to vector<1x128xi1>
    %19 = vector.broadcast %18 : vector<1x128xi1> to vector<8x128xi1>
    %20 = arith.select %19, %12, %17 : vector<8x128xi1>, vector<8x128xf32>
    %21 = arith.truncf %20 : vector<8x128xf32> to vector<8x128xbf16>
    %c0_10 = arith.constant 0 : index
    %c0_11 = arith.constant 0 : index
    %22 = vector.load %arg5[%c0_10, %c0_11] : memref<128x128xbf16, #tpu.memory_space<vmem>>, vector<128x128xbf16>
    %cst_12 = arith.constant dense<0.000000e+00> : vector<8x128xf32>
    %23 = tpu.matmul %21, %22, %cst_12 {dimension_numbers = #tpu.dot_dimension_numbers<[1], [0], [0], [1], [0, 0, 1, 1], [], []>} : vector<8x128xbf16>, vector<128x128xbf16>, vector<8x128xf32> -> vector<8x128xf32>
    %24 = arith.truncf %2 : vector<8x4xf32> to vector<8x4xbf16>
    %c0_13 = arith.constant 0 : index
    %c0_14 = arith.constant 0 : index
    %25 = vector.load %arg6[%c0_13, %c0_14] : memref<4x128xbf16, #tpu.memory_space<vmem>>, vector<4x128xbf16>
    %cst_15 = arith.constant dense<0.000000e+00> : vector<8x128xf32>
    %26 = tpu.matmul %24, %25, %cst_15 {dimension_numbers = #tpu.dot_dimension_numbers<[1], [0], [0], [1], [0, 0, 1, 1], [], []>} : vector<8x4xbf16>, vector<4x128xbf16>, vector<8x128xf32> -> vector<8x128xf32>
    %27 = arith.addf %23, %26 : vector<8x128xf32>
    %c0_16 = arith.constant 0 : index
    %c0_17 = arith.constant 0 : index
    %28 = vector.load %arg7[%c0_16, %c0_17] : memref<1x128xf32, #tpu.memory_space<vmem>>, vector<1x128xf32>
    %29 = vector.broadcast %28 : vector<1x128xf32> to vector<8x128xf32>
    %30 = arith.addf %27, %29 : vector<8x128xf32>
    %c32_i32_18 = arith.constant 32 : i32
    %31 = vector.broadcast %c32_i32_18 : i32 to vector<1x128xi32>
    %32 = arith.cmpi slt, %0, %31 : vector<1x128xi32>
    %cst_19 = arith.constant 0.000000e+00 : f32
    %33 = vector.broadcast %cst_19 : f32 to vector<8x128xf32>
    %34 = arith.maximumf %30, %33 : vector<8x128xf32>
    %cst_20 = arith.constant 0.000000e+00 : f32
    %35 = vector.broadcast %cst_20 : f32 to vector<8x128xf32>
    %36 = arith.cmpf oge, %30, %35 : vector<8x128xf32>
    %cst_21 = arith.constant 0.00999999977 : f32
    %37 = vector.broadcast %cst_21 : f32 to vector<8x128xf32>
    %38 = arith.mulf %37, %30 : vector<8x128xf32>
    %39 = arith.select %36, %30, %38 : vector<8x128xi1>, vector<8x128xf32>
    %40 = vector.shape_cast %32 : vector<1x128xi1> to vector<1x128xi1>
    %41 = vector.broadcast %40 : vector<1x128xi1> to vector<8x128xi1>
    %42 = arith.select %41, %34, %39 : vector<8x128xi1>, vector<8x128xf32>
    %43 = arith.truncf %42 : vector<8x128xf32> to vector<8x128xbf16>
    %c0_22 = arith.constant 0 : index
    %c0_23 = arith.constant 0 : index
    %44 = vector.load %arg8[%c0_22, %c0_23] : memref<128x128xbf16, #tpu.memory_space<vmem>>, vector<128x128xbf16>
    %cst_24 = arith.constant dense<0.000000e+00> : vector<8x128xf32>
    %45 = tpu.matmul %43, %44, %cst_24 {dimension_numbers = #tpu.dot_dimension_numbers<[1], [0], [0], [1], [0, 0, 1, 1], [], []>} : vector<8x128xbf16>, vector<128x128xbf16>, vector<8x128xf32> -> vector<8x128xf32>
    %c0_25 = arith.constant 0 : index
    %c0_26 = arith.constant 0 : index
    %46 = vector.load %arg9[%c0_25, %c0_26] : memref<1x128xf32, #tpu.memory_space<vmem>>, vector<1x128xf32>
    %47 = vector.broadcast %46 : vector<1x128xf32> to vector<8x128xf32>
    %48 = arith.addf %45, %47 : vector<8x128xf32>
    %c4_i32 = arith.constant 4 : i32
    %49 = vector.broadcast %c4_i32 : i32 to vector<1x128xi32>
    %50 = arith.cmpi slt, %0, %49 : vector<1x128xi32>
    %51 = math.tanh %48 : vector<8x128xf32>
    %52 = vector.shape_cast %50 : vector<1x128xi1> to vector<1x128xi1>
    %53 = vector.broadcast %52 : vector<1x128xi1> to vector<8x128xi1>
    %54 = arith.select %53, %51, %48 : vector<8x128xi1>, vector<8x128xf32>
    %c0_27 = arith.constant 0 : index
    %c0_28 = arith.constant 0 : index
    %55 = vector.load %arg10[%c0_27, %c0_28] : memref<8x128xf32, #tpu.memory_space<vmem>>, vector<8x128xf32>
    tpu.vector_store %arg10[%c0_27, %c0_28], %54 {strides = array<i32>} : memref<8x128xf32, #tpu.memory_space<vmem>>, vector<8x128xf32>,
    return
  }
  func.func @transform_0(%arg0: i32) -> (i32, i32) {
    %c0_i32 = arith.constant 0 : i32
    %c0_i32_0 = arith.constant 0 : i32
    return %arg0, %c0_i32 : i32, i32
  }
  func.func @transform_1(%arg0: i32) -> (i32, i32) {
    %c0_i32 = arith.constant 0 : i32
    %c0_i32_0 = arith.constant 0 : i32
    return %arg0, %c0_i32 : i32, i32
  }
  func.func @transform_2(%arg0: i32) -> (i32, i32) {
    %c0_i32 = arith.constant 0 : i32
    %c0_i32_0 = arith.constant 0 : i32
    %c0_i32_1 = arith.constant 0 : i32
    return %c0_i32, %c0_i32_0 : i32, i32
  }
  func.func @transform_3(%arg0: i32) -> (i32, i32) {
    %c0_i32 = arith.constant 0 : i32
    %c0_i32_0 = arith.constant 0 : i32
    %c0_i32_1 = arith.constant 0 : i32
    return %c0_i32, %c0_i32_0 : i32, i32
  }
  func.func @transform_4(%arg0: i32) -> (i32, i32) {
    %c0_i32 = arith.constant 0 : i32
    %c0_i32_0 = arith.constant 0 : i32
    %c0_i32_1 = arith.constant 0 : i32
    return %c0_i32, %c0_i32_0 : i32, i32
  }
  func.func @transform_5(%arg0: i32) -> (i32, i32) {
    %c0_i32 = arith.constant 0 : i32
    %c0_i32_0 = arith.constant 0 : i32
    %c0_i32_1 = arith.constant 0 : i32
    return %c0_i32, %c0_i32_0 : i32, i32
  }
  func.func @transform_6(%arg0: i32) -> (i32, i32) {
    %c0_i32 = arith.constant 0 : i32
    %c0_i32_0 = arith.constant 0 : i32
    %c0_i32_1 = arith.constant 0 : i32
    return %c0_i32, %c0_i32_0 : i32, i32
  }
  func.func @transform_7(%arg0: i32) -> (i32, i32) {
    %c0_i32 = arith.constant 0 : i32
    %c0_i32_0 = arith.constant 0 : i32
    %c0_i32_1 = arith.constant 0 : i32
    return %c0_i32, %c0_i32_0 : i32, i32
  }
  func.func @transform_8(%arg0: i32) -> (i32, i32) {
    %c0_i32 = arith.constant 0 : i32
    %c0_i32_0 = arith.constant 0 : i32
    %c0_i32_1 = arith.constant 0 : i32
    return %c0_i32, %c0_i32_0 : i32, i32
  }
  func.func @transform_9(%arg0: i32) -> (i32, i32) {
    %c0_i32 = arith.constant 0 : i32
    %c0_i32_0 = arith.constant 0 : i32
    return %arg0, %c0_i32 : i32, i32
  }
}

</mosaic_0001>

<llo_original>
// kernel: tpu_custom_call.1
$region0: #{tpu_custom_call.1}
  #allocation0 [shape = 'u32[]', space=smem, size = 0x4, offset = 0x4, fixed_abs, tag = 'smem constant byte address 0x4 - core index']
  #allocation1 [shape = 'u32[144,128]{1,0:T(1,128)}', space=vmem, size = 0x12000, scoped, tag = 'internal scratch']
  %s0 = inlined_call_operand.vmem [shape: f32[8,16], index: 0, kind: input, shape index: {}]
  %s1 = inlined_call_operand.vmem [shape: f32[8,4], index: 1, kind: input, shape index: {}]
  %s2 = inlined_call_operand.vmem [shape: bf16[16,128], index: 2, kind: input, shape index: {}]
  %s3 = inlined_call_operand.vmem [shape: f32[1,128], index: 3, kind: input, shape index: {}]
  %s4 = inlined_call_operand.hbm [shape: bf16[128,128], index: 4, kind: input, shape index: {}]
  %s5 = inlined_call_operand.vmem [shape: bf16[4,128], index: 5, kind: input, shape index: {}]
  %s6 = inlined_call_operand.vmem [shape: f32[1,128], index: 6, kind: input, shape index: {}]
  %s7 = inlined_call_operand.hbm [shape: bf16[128,128], index: 7, kind: input, shape index: {}]
  %s8 = inlined_call_operand.vmem [shape: f32[1,128], index: 8, kind: input, shape index: {}]
  %s9 = inlined_call_operand.hbm [shape: f32[8,128], index: 9, kind: output, shape index: {}]
  %s10 = sld [smem:[#allocation0]]
  $region54: #{tpu_custom_call.1} parent=0
    _
  %s12 = ssub.s32 1, %s10
  %s13 = scalar_select 0, %s12, %s10
  $region1: #{tpu_custom_call.1} parent=0
    #allocation2 [shape = 'u8[32768]{0}', space=vmem, size = 0x8000, scoped, tag = 'input window, operand 4, single buffered']
    #allocation3 [shape = 's32[1]{0}', space=sflag, size = 0x4, scoped, tag = 'scoped memory for tpu_custom_call.1']
    #allocation4 [shape = 's32[1]{0}', space=sflag, size = 0x4, scoped, tag = 'scoped memory for tpu_custom_call.1']
    #allocation5 [shape = 'u8[32768]{0}', space=vmem, size = 0x8000, scoped, tag = 'input window, operand 7, single buffered']
    #allocation6 [shape = 's32[1]{0}', space=sflag, size = 0x4, scoped, tag = 'scoped memory for tpu_custom_call.1']
    #allocation7 [shape = 'u8[4096]{0}', space=vmem, size = 0x1000, scoped, tag = 'output window, operand 0, single buffered']
    %14 = vsyncpa [#allocation3], 0
    %15 = vsyncpa [#allocation6], 0
    %16 = vsyncpa [#allocation4], 0
    // Predicated region
    $region2: #{tpu_custom_call.1} parent=1 // pred_check
      _
    $region3: #{tpu_custom_call.1} parent=1 // pred_check_branch
      %18 = sbr.rel (0) target = $region5
    $region4: #{tpu_custom_call.1} parent=1 // pred_region
      _
    $region5: #{tpu_custom_call.1} parent=1 // pred_fallthru
      _
    // Predicated region
    $region6: #{tpu_custom_call.1} parent=1 // pred_check
      _
    $region7: #{tpu_custom_call.1} parent=1 // pred_check_branch
      %20 = sbr.rel (0) target = $region9
    $region8: #{tpu_custom_call.1} parent=1 // pred_region
      _
    $region9: #{tpu_custom_call.1} parent=1 // pred_fallthru
      _
    // Predicated region
    $region10: #{tpu_custom_call.1} parent=1 // pred_check
      _
    $region11: #{tpu_custom_call.1} parent=1 // pred_check_branch
      %22 = sbr.rel (0) target = $region13
    $region12: #{tpu_custom_call.1} parent=1 // pred_region
      _
    $region13: #{tpu_custom_call.1} parent=1 // pred_fallthru
      _
    // Predicated region
    $region14: #{tpu_custom_call.1} parent=1 // pred_check
      _
    $region15: #{tpu_custom_call.1} parent=1 // pred_check_branch
      %24 = sbr.rel (0) target = $region17
    $region16: #{tpu_custom_call.1} parent=1 // pred_region
      _
    $region17: #{tpu_custom_call.1} parent=1 // pred_fallthru
      _
    // Predicated region
    $region18: #{tpu_custom_call.1} parent=1 // pred_check
      _
    $region19: #{tpu_custom_call.1} parent=1 // pred_check_branch
      %26 = sbr.rel (0) target = $region21
    $region20: #{tpu_custom_call.1} parent=1 // pred_region
      %s28 = ssub.s32 1024, 1024
      %29 = vsyncadd [#allocation3], %s28
      %s30 = sshll.u32 [#allocation2], 4
      %s31 = int_to_ptr.vmem [resolvable:$true] %s30
      %36 = dma.hbm_to_vmem [thread:$0]  %s4, 1024, %s31, [#allocation3], 64, 64, 4
    $region21: #{tpu_custom_call.1} parent=1 // pred_fallthru
      _
    // Predicated region
    $region22: #{tpu_custom_call.1} parent=1 // pred_check
      _
    $region23: #{tpu_custom_call.1} parent=1 // pred_check_branch
      %38 = sbr.rel (0) target = $region25
    $region24: #{tpu_custom_call.1} parent=1 // pred_region
      _
    $region25: #{tpu_custom_call.1} parent=1 // pred_fallthru
      _
    // Predicated region
    $region26: #{tpu_custom_call.1} parent=1 // pred_check
      _
    $region27: #{tpu_custom_call.1} parent=1 // pred_check_branch
      %40 = sbr.rel (0) target = $region29
    $region28: #{tpu_custom_call.1} parent=1 // pred_region
      _
    $region29: #{tpu_custom_call.1} parent=1 // pred_fallthru
      _
    // Predicated region
    $region30: #{tpu_custom_call.1} parent=1 // pred_check
      _
    $region31: #{tpu_custom_call.1} parent=1 // pred_check_branch
      %42 = sbr.rel (0) target = $region33
    $region32: #{tpu_custom_call.1} parent=1 // pred_region
      %s44 = ssub.s32 1024, 1024
      %45 = vsyncadd [#allocation6], %s44
      %s46 = sshll.u32 [#allocation5], 4
      %s47 = int_to_ptr.vmem [resolvable:$true] %s46
      %52 = dma.hbm_to_vmem [thread:$0]  %s7, 1024, %s47, [#allocation6], 64, 64, 4
    $region33: #{tpu_custom_call.1} parent=1 // pred_fallthru
      _
    // Predicated region
    $region34: #{tpu_custom_call.1} parent=1 // pred_check
      _
    $region35: #{tpu_custom_call.1} parent=1 // pred_check_branch
      %54 = sbr.rel (0) target = $region37
    $region36: #{tpu_custom_call.1} parent=1 // pred_region
      _
    $region37: #{tpu_custom_call.1} parent=1 // pred_fallthru
      _
    // Predicated region
    $region38: #{tpu_custom_call.1} parent=1 // pred_check
      _
    $region39: #{tpu_custom_call.1} parent=1 // pred_check_branch
      %56 = sbr.rel (0) target = $region41
    $region40: #{tpu_custom_call.1} parent=1 // pred_region
      %57 = dma.done [#allocation3], 1024
    $region41: #{tpu_custom_call.1} parent=1 // pred_fallthru
      _
    // Predicated region
    $region42: #{tpu_custom_call.1} parent=1 // pred_check
      _
    $region43: #{tpu_custom_call.1} parent=1 // pred_check_branch
      %59 = sbr.rel (0) target = $region45
    $region44: #{tpu_custom_call.1} parent=1 // pred_region
      %60 = dma.done [#allocation6], 1024
    $region45: #{tpu_custom_call.1} parent=1 // pred_fallthru
      _
    %v62 = vlaneseq
    %v63 = vand.u32 %v62, 127
    %v64 = vld [vmem:[%s0] sm:$0xff]
    %v65 = vld [vmem:[%s1] sm:$0xff]
    %v66 = vpack.c.bf16 %v64, %v64
    %v67 = vld [vmem:[%s2] sm:$0xf]
    %v68 = vld [vmem:[%s2 + $0x4] sm:$0xf]
    %v69 = vld [vmem:[%s3] sm:$0x1]
    %v71 = vlaneseq
    %v72 = vshrl.u32 %v71, 7
    %v73 = vsub.s32 0, %v72
    %v74 = vrot.slane %v69, %v73
    %v78 = vunpack.c.l.b16 %v67
    %v79 = vunpack.c.l.b16 %v68
    %v80 = vpack.c.b16 %v79, %v78
    %vm82 = vcmask 130048
    %v84 = vsel %vm82, %v66, 0
    %86 = vmatprep.subr.bf16.mxu0 0
    %87 = vmatpush1.bf16.msra.mxu0 %v80
    %88 = vmatprep.subr.bf16.mxu0 0
    %89 = vmatpush1.bf16.msra.mxu0 0
    %90 = vmatprep.subr.bf16.mxu0 0
    %91 = vmatpush1.bf16.msra.mxu0 0
    %92 = vmatprep.subr.bf16.mxu0 0
    %93 = vmatpush1.bf16.msra.mxu0 0
    %94 = vmatprep.subr.bf16.mxu0 0
    %95 = vmatpush1.bf16.msra.mxu0 0
    %96 = vmatprep.subr.bf16.mxu0 0
    %97 = vmatpush1.bf16.msra.mxu0 0
    %98 = vmatprep.subr.bf16.mxu0 0
    %99 = vmatpush1.bf16.msra.mxu0 0
    %100 = vmatprep.subr.bf16.mxu0 0
    %101 = vmatpush1.bf16.msra.mxu0 0
    %102 = vmatprep.subr.bf16.mxu0 0
    %103 = vmatpush1.bf16.msra.mxu0 0
    %104 = vmatprep.subr.bf16.mxu0 0
    %105 = vmatpush1.bf16.msra.mxu0 0
    %106 = vmatprep.subr.bf16.mxu0 0
    %107 = vmatpush1.bf16.msra.mxu0 0
    %108 = vmatprep.subr.bf16.mxu0 0
    %109 = vmatpush1.bf16.msra.mxu0 0
    %110 = vmatprep.subr.bf16.mxu0 0
    %111 = vmatpush1.bf16.msra.mxu0 0
    %112 = vmatprep.subr.bf16.mxu0 0
    %113 = vmatpush1.bf16.msra.mxu0 0
    %114 = vmatprep.subr.bf16.mxu0 0
    %115 = vmatpush1.bf16.msra.mxu0 0
    %116 = vmatprep.subr.bf16.mxu0 0
    %117 = vmatpush1.bf16.msra.mxu0 0
    %118 = vmatprep.mubr.bf16.mxu0 0
    %119 = vmatmul.mubr.bf16.gmra.mrb[0].mxu0 %v84
    %v120 = vpop.f32.mrb[0].mxu0
    %v121 = vadd.f32 %v74, %v120
    %v122 = vpop.f32.mrb[0].mxu0
    %v123 = vpop.f32.mrb[0].mxu0
    %v124 = vpop.f32.mrb[0].mxu0
    %125 = vdwg.mxu0
    %vm126 = vcmp.lt.s32.totalorder %v63, 32
    %v127 = vmax.f32 %v121, 0.0
    %vm128 = vcmp.ge.f32.partialorder %v121, 0.0
    %v129 = vmul.f32 %v121, 0.01
    %v130 = vsel %vm128, %v121, %v129
    %v131 = vsel %vm126, 1, 0
    %vm132 = vcmp.eq.s32.totalorder %v131, 1
    %v133 = vsel %vm132, %v127, %v130
    %v134 = vpack.c.bf16 %v133, %v133
    %v135 = vld [vmem:[#allocation2] sm:$0xf]
    %v136 = vld [vmem:[#allocation2 + $0x4] sm:$0xf]
    %v137 = vld [vmem:[#allocation2 + $0x8] sm:$0xf]
    %v138 = vld [vmem:[#allocation2 + $0xc] sm:$0xf]
    %v139 = vld [vmem:[#allocation2 + $0x10] sm:$0xf]
    %v140 = vld [vmem:[#allocation2 + $0x14] sm:$0xf]
    %v141 = vld [vmem:[#allocation2 + $0x18] sm:$0xf]
    %v142 = vld [vmem:[#allocation2 + $0x1c] sm:$0xf]
    %v143 = vld [vmem:[#allocation2 + $0x20] sm:$0xf]
    %v144 = vld [vmem:[#allocation2 + $0x24] sm:$0xf]
    %v145 = vld [vmem:[#allocation2 + $0x28] sm:$0xf]
    %v146 = vld [vmem:[#allocation2 + $0x2c] sm:$0xf]
    %v147 = vld [vmem:[#allocation2 + $0x30] sm:$0xf]
    %v148 = vld [vmem:[#allocation2 + $0x34] sm:$0xf]
    %v149 = vld [vmem:[#allocation2 + $0x38] sm:$0xf]
    %v150 = vld [vmem:[#allocation2 + $0x3c] sm:$0xf]
    %v151 = vpack.c.bf16 %v65, %v65
    %v152 = vld [vmem:[%s5] sm:$0x3]
    %vm153 = vcmask 31744
    %v155 = vsel %vm153, %v151, 0
    %vm157 = vcmask 1041408
    %v159 = vsel %vm157, %v152, 0
    %161 = vmatprep.subr.bf16.mxu0 0
    %162 = vmatpush1.bf16.msra.mxu0 %v159
    %163 = vmatprep.subr.bf16.mxu0 0
    %164 = vmatpush1.bf16.msra.mxu0 0
    %165 = vmatprep.subr.bf16.mxu0 0
    %166 = vmatpush1.bf16.msra.mxu0 0
    %167 = vmatprep.subr.bf16.mxu0 0
    %168 = vmatpush1.bf16.msra.mxu0 0
    %169 = vmatprep.subr.bf16.mxu0 0
    %170 = vmatpush1.bf16.msra.mxu0 0
    %171 = vmatprep.subr.bf16.mxu0 0
    %172 = vmatpush1.bf16.msra.mxu0 0
    %173 = vmatprep.subr.bf16.mxu0 0
    %174 = vmatpush1.bf16.msra.mxu0 0
    %175 = vmatprep.subr.bf16.mxu0 0
    %176 = vmatpush1.bf16.msra.mxu0 0
    %177 = vmatprep.subr.bf16.mxu0 0
    %178 = vmatpush1.bf16.msra.mxu0 0
    %179 = vmatprep.subr.bf16.mxu0 0
    %180 = vmatpush1.bf16.msra.mxu0 0
    %181 = vmatprep.subr.bf16.mxu0 0
    %182 = vmatpush1.bf16.msra.mxu0 0
    %183 = vmatprep.subr.bf16.mxu0 0
    %184 = vmatpush1.bf16.msra.mxu0 0
    %185 = vmatprep.subr.bf16.mxu0 0
    %186 = vmatpush1.bf16.msra.mxu0 0
    %187 = vmatprep.subr.bf16.mxu0 0
    %188 = vmatpush1.bf16.msra.mxu0 0
    %189 = vmatprep.subr.bf16.mxu0 0
    %190 = vmatpush1.bf16.msra.mxu0 0
    %191 = vmatprep.subr.bf16.mxu0 0
    %192 = vmatpush1.bf16.msra.mxu0 0
    %193 = vmatprep.mubr.bf16.mxu0 0
    %194 = vmatmul.mubr.bf16.gmra.mrb[0].mxu0 %v155
    %v195 = vpop.f32.mrb[0].mxu0
    %v196 = vadd.f32 0.0, %v195
    %v197 = vpop.f32.mrb[0].mxu0
    %v198 = vpop.f32.mrb[0].mxu0
    %v199 = vpop.f32.mrb[0].mxu0
    %200 = vdwg.mxu0
    %v217 = vunpack.c.l.b16 %v135
    %v218 = vunpack.c.l.b16 %v136
    %v219 = vunpack.c.l.b16 %v137
    %v220 = vunpack.c.l.b16 %v138
    %v221 = vunpack.c.l.b16 %v139
    %v222 = vunpack.c.l.b16 %v140
    %v223 = vunpack.c.l.b16 %v141
    %v224 = vunpack.c.l.b16 %v142
    %v225 = vunpack.c.l.b16 %v143
    %v226 = vunpack.c.l.b16 %v144
    %v227 = vunpack.c.l.b16 %v145
    %v228 = vunpack.c.l.b16 %v146
    %v229 = vunpack.c.l.b16 %v147
    %v230 = vunpack.c.l.b16 %v148
    %v231 = vunpack.c.l.b16 %v149
    %v232 = vunpack.c.l.b16 %v150
    %v233 = vpack.c.b16 %v218, %v217
    %v234 = vpack.c.b16 %v220, %v219
    %v235 = vpack.c.b16 %v222, %v221
    %v236 = vpack.c.b16 %v224, %v223
    %v237 = vpack.c.b16 %v226, %v225
    %v238 = vpack.c.b16 %v228, %v227
    %v239 = vpack.c.b16 %v230, %v229
    %v240 = vpack.c.b16 %v232, %v231
    %249 = vmatprep.subr.bf16.mxu0 0
    %250 = vmatpush1.bf16.msra.mxu0 %v233
    %251 = vmatprep.subr.bf16.mxu0 0
    %252 = vmatpush1.bf16.msra.mxu0 %v234
    %253 = vmatprep.subr.bf16.mxu0 0
    %254 = vmatpush1.bf16.msra.mxu0 %v235
    %255 = vmatprep.subr.bf16.mxu0 0
    %256 = vmatpush1.bf16.msra.mxu0 %v236
    %257 = vmatprep.subr.bf16.mxu0 0
    %258 = vmatpush1.bf16.msra.mxu0 %v237
    %259 = vmatprep.subr.bf16.mxu0 0
    %260 = vmatpush1.bf16.msra.mxu0 %v238
    %261 = vmatprep.subr.bf16.mxu0 0
    %262 = vmatpush1.bf16.msra.mxu0 %v239
    %263 = vmatprep.subr.bf16.mxu0 0
    %264 = vmatpush1.bf16.msra.mxu0 %v240
    %265 = vmatprep.subr.bf16.mxu0 0
    %266 = vmatpush1.bf16.msra.mxu0 0
    %267 = vmatprep.subr.bf16.mxu0 0
    %268 = vmatpush1.bf16.msra.mxu0 0
    %269 = vmatprep.subr.bf16.mxu0 0
    %270 = vmatpush1.bf16.msra.mxu0 0
    %271 = vmatprep.subr.bf16.mxu0 0
    %272 = vmatpush1.bf16.msra.mxu0 0
    %273 = vmatprep.subr.bf16.mxu0 0
    %274 = vmatpush1.bf16.msra.mxu0 0
    %275 = vmatprep.subr.bf16.mxu0 0
    %276 = vmatpush1.bf16.msra.mxu0 0
    %277 = vmatprep.subr.bf16.mxu0 0
    %278 = vmatpush1.bf16.msra.mxu0 0
    %279 = vmatprep.subr.bf16.mxu0 0
    %280 = vmatpush1.bf16.msra.mxu0 0
    %281 = vmatprep.mubr.bf16.mxu0 0
    %282 = vmatmul.mubr.bf16.gmra.mrb[0].mxu0 %v134
    %v283 = vpop.f32.mrb[0].mxu0
    %v284 = vadd.f32 %v196, %v283
    %v285 = vpop.f32.mrb[0].mxu0
    %v286 = vpop.f32.mrb[0].mxu0
    %v287 = vpop.f32.mrb[0].mxu0
    %288 = vdwg.mxu0
    %v289 = vld [vmem:[%s6] sm:$0x1]
    %v291 = vlaneseq
    %v292 = vshrl.u32 %v291, 7
    %v293 = vsub.s32 0, %v292
    %v294 = vrot.slane %v289, %v293
    %v296 = vadd.f32 %v284, %v294
    %v297 = vmax.f32 %v296, 0.0
    %vm298 = vcmp.ge.f32.partialorder %v296, 0.0
    %v299 = vmul.f32 %v296, 0.01
    %v300 = vsel %vm298, %v296, %v299
    %v301 = vsel %vm132, %v297, %v300
    %v302 = vpack.c.bf16 %v301, %v301
    %v303 = vld [vmem:[#allocation5] sm:$0xf]
    %v304 = vld [vmem:[#allocation5 + $0x4] sm:$0xf]
    %v305 = vld [vmem:[#allocation5 + $0x8] sm:$0xf]
    %v306 = vld [vmem:[#allocation5 + $0xc] sm:$0xf]
    %v307 = vld [vmem:[#allocation5 + $0x10] sm:$0xf]
    %v308 = vld [vmem:[#allocation5 + $0x14] sm:$0xf]
    %v309 = vld [vmem:[#allocation5 + $0x18] sm:$0xf]
    %v310 = vld [vmem:[#allocation5 + $0x1c] sm:$0xf]
    %v311 = vld [vmem:[#allocation5 + $0x20] sm:$0xf]
    %v312 = vld [vmem:[#allocation5 + $0x24] sm:$0xf]
    %v313 = vld [vmem:[#allocation5 + $0x28] sm:$0xf]
    %v314 = vld [vmem:[#allocation5 + $0x2c] sm:$0xf]
    %v315 = vld [vmem:[#allocation5 + $0x30] sm:$0xf]
    %v316 = vld [vmem:[#allocation5 + $0x34] sm:$0xf]
    %v317 = vld [vmem:[#allocation5 + $0x38] sm:$0xf]
    %v318 = vld [vmem:[#allocation5 + $0x3c] sm:$0xf]
    %v319 = vld [vmem:[%s8] sm:$0x1]
    %v321 = vlaneseq
    %v322 = vshrl.u32 %v321, 7
    %v323 = vsub.s32 0, %v322
    %v324 = vrot.slane %v319, %v323
    %v342 = vunpack.c.l.b16 %v303
    %v343 = vunpack.c.l.b16 %v304
    %v344 = vunpack.c.l.b16 %v305
    %v345 = vunpack.c.l.b16 %v306
    %v346 = vunpack.c.l.b16 %v307
    %v347 = vunpack.c.l.b16 %v308
    %v348 = vunpack.c.l.b16 %v309
    %v349 = vunpack.c.l.b16 %v310
    %v350 = vunpack.c.l.b16 %v311
    %v351 = vunpack.c.l.b16 %v312
    %v352 = vunpack.c.l.b16 %v313
    %v353 = vunpack.c.l.b16 %v314
    %v354 = vunpack.c.l.b16 %v315
    %v355 = vunpack.c.l.b16 %v316
    %v356 = vunpack.c.l.b16 %v317
    %v357 = vunpack.c.l.b16 %v318
    %v358 = vpack.c.b16 %v343, %v342
    %v359 = vpack.c.b16 %v345, %v344
    %v360 = vpack.c.b16 %v347, %v346
    %v361 = vpack.c.b16 %v349, %v348
    %v362 = vpack.c.b16 %v351, %v350
    %v363 = vpack.c.b16 %v353, %v352
    %v364 = vpack.c.b16 %v355, %v354
    %v365 = vpack.c.b16 %v357, %v356
    %374 = vmatprep.subr.bf16.mxu0 0
    %375 = vmatpush1.bf16.msra.mxu0 %v358
    %376 = vmatprep.subr.bf16.mxu0 0
    %377 = vmatpush1.bf16.msra.mxu0 %v359
    %378 = vmatprep.subr.bf16.mxu0 0
    %379 = vmatpush1.bf16.msra.mxu0 %v360
    %380 = vmatprep.subr.bf16.mxu0 0
    %381 = vmatpush1.bf16.msra.mxu0 %v361
    %382 = vmatprep.subr.bf16.mxu0 0
    %383 = vmatpush1.bf16.msra.mxu0 %v362
    %384 = vmatprep.subr.bf16.mxu0 0
    %385 = vmatpush1.bf16.msra.mxu0 %v363
    %386 = vmatprep.subr.bf16.mxu0 0
    %387 = vmatpush1.bf16.msra.mxu0 %v364
    %388 = vmatprep.subr.bf16.mxu0 0
    %389 = vmatpush1.bf16.msra.mxu0 %v365
    %390 = vmatprep.subr.bf16.mxu0 0
    %391 = vmatpush1.bf16.msra.mxu0 0
    %392 = vmatprep.subr.bf16.mxu0 0
    %393 = vmatpush1.bf16.msra.mxu0 0
    %394 = vmatprep.subr.bf16.mxu0 0
    %395 = vmatpush1.bf16.msra.mxu0 0
    %396 = vmatprep.subr.bf16.mxu0 0
    %397 = vmatpush1.bf16.msra.mxu0 0
    %398 = vmatprep.subr.bf16.mxu0 0
    %399 = vmatpush1.bf16.msra.mxu0 0
    %400 = vmatprep.subr.bf16.mxu0 0
    %401 = vmatpush1.bf16.msra.mxu0 0
    %402 = vmatprep.subr.bf16.mxu0 0
    %403 = vmatpush1.bf16.msra.mxu0 0
    %404 = vmatprep.subr.bf16.mxu0 0
    %405 = vmatpush1.bf16.msra.mxu0 0
    %406 = vmatprep.mubr.bf16.mxu0 0
    %407 = vmatmul.mubr.bf16.gmra.mrb[0].mxu0 %v302
    %v408 = vpop.f32.mrb[0].mxu0
    %v409 = vadd.f32 %v324, %v408
    %v410 = vpop.f32.mrb[0].mxu0
    %v411 = vpop.f32.mrb[0].mxu0
    %v412 = vpop.f32.mrb[0].mxu0
    %413 = vdwg.mxu0
    %vm414 = vcmp.lt.s32.totalorder %v63, 4
    %v415 = vtanh.pop %v409
    %v416 = vsel %vm414, 1, 0
    %vm417 = vcmp.eq.s32.totalorder %v416, 1
    %v418 = vsel %vm417, %v415, %v409
    %419 = vst [vmem:[#allocation7] sm:$0xff] %v418
    // Predicated region
    $region46: #{tpu_custom_call.1} parent=1 // pred_check
      _
    $region47: #{tpu_custom_call.1} parent=1 // pred_check_branch
      %421 = sbr.rel (0) target = $region49
    $region48: #{tpu_custom_call.1} parent=1 // pred_region
      %s423 = ssub.s32 128, 128
      %424 = vsyncadd [#allocation4], %s423
      %s426 = sshll.u32 [#allocation7], 4
      %s427 = int_to_ptr.vmem [resolvable:$true] %s426
      %429 = dma.vmem_to_hbm [thread:$0]  %s427, 128, %s9, [#allocation4]
    $region49: #{tpu_custom_call.1} parent=1 // pred_fallthru
      _
    // Predicated region
    $region50: #{tpu_custom_call.1} parent=1 // pred_check
      _
    $region51: #{tpu_custom_call.1} parent=1 // pred_check_branch
      %431 = sbr.rel (0) target = $region53
    $region52: #{tpu_custom_call.1} parent=1 // pred_region
      %432 = dma.done [#allocation4], 128
    $region53: #{tpu_custom_call.1} parent=1 // pred_fallthru
      _
    %433 = vsyncpa [#allocation3], 1
    %434 = vsyncpa [#allocation6], 1
    %435 = vsyncpa [#allocation4], 1

</llo_original>
